<compile_context>
chip_gen: v5e
topology: v5e:2x2
jax: 0.10.0
libtpu: 0.0.40
codegen_flags: <defaults>
</compile_context>

<pallas_src>
import functools

import jax
import jax.numpy as jnp
from jax.experimental import pallas as pl
from jax.experimental.pallas import tpu as pltpu

EPS = 1e-5
MAX_TILE_M = 1024                  # rows of the M = N*Ho*Wo axis per grid step
LANE = 128                         # pad channel / contraction dims to this
VMEM_LIMIT_BYTES = 32 * 1024 * 1024  # explicit scoped-VMEM budget (v7x-safe)


# ----------------------------------------------------------------------------
# Small helpers
# ----------------------------------------------------------------------------
def _round_up(x, m):
    return (x + m - 1) // m * m


def _choose_tiling(m):
    """Return (tile_m, num_tiles, m_padded) for the M row axis."""
    nt = -(-m // MAX_TILE_M)
    tile = _round_up(-(-m // nt), 8)
    return tile, nt, tile * nt


def _pad2(a, rows, cols):
    r, c = a.shape
    return jnp.pad(a, ((0, rows - r), (0, cols - c)))


def _compiler_params():
    return pltpu.CompilerParams(
        dimension_semantics=("parallel",),
        vmem_limit_bytes=VMEM_LIMIT_BYTES)


def _nonlin(y, beta_value):
    """ReLU (beta==0) or Softplus(beta) with PyTorch threshold=20. f32 math."""
    if beta_value > 0.0:
        z = beta_value * y
        return jnp.where(z > 20.0, y, jnp.log1p(jnp.exp(z)) / beta_value)
    return jnp.maximum(y, 0.0)


def _stats_rows(vals, nrows):
    """Pack per-channel (1, C) row vectors into an (nrows, C) stats block."""
    c = vals[0].shape[-1]
    row = jax.lax.broadcasted_iota(jnp.int32, (nrows, c), 0)
    out = jnp.zeros((nrows, c), jnp.float32)
    for k, v in enumerate(vals):
        out = out + jnp.where(row == k, v, 0.0)
    return out


# ----------------------------------------------------------------------------
# Pallas kernels
# ----------------------------------------------------------------------------
def matmul_stats_kernel(p_ref, w_ref, y_ref, st_ref):
    """Tiled conv-as-matmul + per-tile per-channel sum / sum-of-squares."""
    y = jnp.dot(p_ref[...], w_ref[...], preferred_element_type=jnp.float32)
    y_ref[...] = y
    s = jnp.sum(y, axis=0, keepdims=True)
    ss = jnp.sum(y * y, axis=0, keepdims=True)
    st_ref[...] = _stats_rows([s, ss], st_ref.shape[0])


def dual_matmul_stats_kernel(p_ref, xs_ref, w_ref, wsc_ref,
                             y_ref, ysc_ref, st_ref):
    """conv2 matmul + fused shortcut 1x1 matmul, with stats for both."""
    y = jnp.dot(p_ref[...], w_ref[...], preferred_element_type=jnp.float32)
    ysc = jnp.dot(xs_ref[...], wsc_ref[...], preferred_element_type=jnp.float32)
    y_ref[...] = y
    ysc_ref[...] = ysc
    st_ref[...] = _stats_rows(
        [jnp.sum(y, axis=0, keepdims=True),
         jnp.sum(y * y, axis=0, keepdims=True),
         jnp.sum(ysc, axis=0, keepdims=True),
         jnp.sum(ysc * ysc, axis=0, keepdims=True)], st_ref.shape[0])


def bn_act_kernel(y_ref, s_ref, b_ref, o_ref, *, beta_value):
    """Apply folded BN scale/bias + nonlinearity (f32), tile-wise."""
    y = y_ref[...] * s_ref[...] + b_ref[...]
    o_ref[...] = _nonlin(y, beta_value).astype(o_ref.dtype)


def bn_res_act_kernel(y_ref, sc_ref, s_ref, b_ref, ssc_ref, bsc_ref, o_ref,
                      *, decay, beta_value):
    """bn2 apply, shortcut-BN apply, decay*out + shortcut, nonlin (f32)."""
    y = y_ref[...] * s_ref[...] + b_ref[...]
    sc = sc_ref[...] * ssc_ref[...] + bsc_ref[...]
    o_ref[...] = _nonlin(decay * y + sc, beta_value).astype(o_ref.dtype)


# ----------------------------------------------------------------------------
# pallas_call wrappers (tiled over the M row axis)
# ----------------------------------------------------------------------------
def matmul_stats(p, w, tile):
    m_pad, k_pad = p.shape
    c_pad = w.shape[1]
    nt = m_pad // tile
    return pl.pallas_call(
        matmul_stats_kernel,
        out_shape=(jax.ShapeDtypeStruct((m_pad, c_pad), jnp.float32),
                   jax.ShapeDtypeStruct((nt * 8, c_pad), jnp.float32)),
        grid=(nt,),
        in_specs=[pl.BlockSpec((tile, k_pad), lambda i: (i, 0)),
                  pl.BlockSpec((k_pad, c_pad), lambda i: (0, 0))],
        out_specs=(pl.BlockSpec((tile, c_pad), lambda i: (i, 0)),
                   pl.BlockSpec((8, c_pad), lambda i: (i, 0))),
        compiler_params=_compiler_params(),
    )(p, w)


def dual_matmul_stats(p, xs, w, wsc, tile):
    m_pad, k_pad = p.shape
    ks_pad = xs.shape[1]
    c_pad = w.shape[1]
    nt = m_pad // tile
    return pl.pallas_call(
        dual_matmul_stats_kernel,
        out_shape=(jax.ShapeDtypeStruct((m_pad, c_pad), jnp.float32),
                   jax.ShapeDtypeStruct((m_pad, c_pad), jnp.float32),
                   jax.ShapeDtypeStruct((nt * 8, c_pad), jnp.float32)),
        grid=(nt,),
        in_specs=[pl.BlockSpec((tile, k_pad), lambda i: (i, 0)),
                  pl.BlockSpec((tile, ks_pad), lambda i: (i, 0)),
                  pl.BlockSpec((k_pad, c_pad), lambda i: (0, 0)),
                  pl.BlockSpec((ks_pad, c_pad), lambda i: (0, 0))],
        out_specs=(pl.BlockSpec((tile, c_pad), lambda i: (i, 0)),
                   pl.BlockSpec((tile, c_pad), lambda i: (i, 0)),
                   pl.BlockSpec((8, c_pad), lambda i: (i, 0))),
        compiler_params=_compiler_params(),
    )(p, xs, w, wsc)


def bn_act(y, scale, bias, tile, *, beta_value, out_dtype):
    m_pad, c_pad = y.shape
    nt = m_pad // tile
    return pl.pallas_call(
        functools.partial(bn_act_kernel, beta_value=beta_value),
        out_shape=jax.ShapeDtypeStruct((m_pad, c_pad), out_dtype),
        grid=(nt,),
        in_specs=[pl.BlockSpec((tile, c_pad), lambda i: (i, 0)),
                  pl.BlockSpec((1, c_pad), lambda i: (0, 0)),
                  pl.BlockSpec((1, c_pad), lambda i: (0, 0))],
        out_specs=pl.BlockSpec((tile, c_pad), lambda i: (i, 0)),
        compiler_params=_compiler_params(),
    )(y, scale, bias)


def bn_res_act(y, sc, s2, b2, ssc, bsc, tile, *, decay, beta_value):
    m_pad, c_pad = y.shape
    nt = m_pad // tile
    return pl.pallas_call(
        functools.partial(bn_res_act_kernel, decay=decay,
                          beta_value=beta_value),
        out_shape=jax.ShapeDtypeStruct((m_pad, c_pad), jnp.float32),
        grid=(nt,),
        in_specs=[pl.BlockSpec((tile, c_pad), lambda i: (i, 0)),
                  pl.BlockSpec((tile, c_pad), lambda i: (i, 0)),
                  pl.BlockSpec((1, c_pad), lambda i: (0, 0)),
                  pl.BlockSpec((1, c_pad), lambda i: (0, 0)),
                  pl.BlockSpec((1, c_pad), lambda i: (0, 0)),
                  pl.BlockSpec((1, c_pad), lambda i: (0, 0))],
        out_specs=pl.BlockSpec((tile, c_pad), lambda i: (i, 0)),
        compiler_params=_compiler_params(),
    )(y, sc, s2, b2, ssc, bsc)


# ----------------------------------------------------------------------------
# JAX glue: im2col, weight folding, BN stat folding, forward wrapper
# ----------------------------------------------------------------------------
def im2col(x_nhwc, ksize, stride, pad):
    """Return ((N*Ho*Wo, ksize*ksize*C), Ho, Wo) patches, order (kh, kw, c)."""
    N, H, W, C = x_nhwc.shape
    xp = jnp.pad(x_nhwc, ((0, 0), (pad, pad), (pad, pad), (0, 0)))
    Ho = (H + 2 * pad - ksize) // stride + 1
    Wo = (W + 2 * pad - ksize) // stride + 1
    cols = []
    for kh in range(ksize):
        for kw in range(ksize):
            cols.append(xp[:, kh:kh + stride * Ho:stride,
                           kw:kw + stride * Wo:stride, :])
    patches = jnp.concatenate(cols, axis=-1)          # (N, Ho, Wo, k*k*C)
    return patches.reshape(N * Ho * Wo, ksize * ksize * C), Ho, Wo


def fold_conv_weight(w_oihw):
    """(Cout, Cin, kh, kw) -> (kh*kw*Cin, Cout), matching im2col order."""
    co, ci, kh, kw = w_oihw.shape
    return jnp.transpose(w_oihw, (2, 3, 1, 0)).reshape(kh * kw * ci, co)


def _fold_bn_from_stats(st, row_sum, row_sq, m_real, g, b, c_pad):
    """Fold batch mean/var (+ gamma/beta) into per-channel scale/bias (1,C)."""
    stv = st.reshape(-1, 8, st.shape[-1])
    s = jnp.sum(stv[:, row_sum, :], axis=0)
    ss = jnp.sum(stv[:, row_sq, :], axis=0)
    mean = s / m_real
    var = jnp.maximum(ss / m_real - mean * mean, 0.0)   # biased var (PyTorch)
    gp = _pad2(g.reshape(1, -1).astype(jnp.float32), 1, c_pad)
    bp = _pad2(b.reshape(1, -1).astype(jnp.float32), 1, c_pad)
    scale = gp * jax.lax.rsqrt(var + EPS)[None]
    bias = bp - mean[None] * scale
    return scale, bias


def basic_block_forward(x_nchw, params, *, stride, beta_value, decay):
    N, Cin, H, W = x_nchw.shape
    planes = params["w1"].shape[0]
    x = jnp.transpose(x_nchw, (0, 2, 3, 1)).astype(jnp.float32)   # NHWC f32

    # ---- conv1: im2col (bf16 patches) -> tiled matmul+stats -> BN + nonlin
    p1, Ho, Wo = im2col(x, 3, stride, 1)
    M = N * Ho * Wo
    tile, _, m_pad = _choose_tiling(M)
    c_pad = _round_up(planes, LANE)
    k1_pad = _round_up(p1.shape[1], LANE)

    p1p = _pad2(p1, m_pad, k1_pad).astype(jnp.bfloat16)
    w1 = _pad2(fold_conv_weight(params["w1"]), k1_pad, c_pad).astype(jnp.bfloat16)
    y1, st1 = matmul_stats(p1p, w1, tile)
    s1, b1 = _fold_bn_from_stats(st1, 0, 1, M, params["g1"], params["b1"], c_pad)
    # bf16 out1 halves HBM traffic for the conv2 im2col expansion.
    out1 = bn_act(y1, s1, b1, tile, beta_value=beta_value,
                  out_dtype=jnp.bfloat16)
    out1_nhwc = out1[:M, :planes].reshape(N, Ho, Wo, planes)

    # ---- conv2 patches (already bf16) ----
    p2, _, _ = im2col(out1_nhwc, 3, 1, 1)
    k2_pad = _round_up(p2.shape[1], LANE)
    p2p = _pad2(p2, m_pad, k2_pad)
    w2 = _pad2(fold_conv_weight(params["w2"]), k2_pad, c_pad).astype(jnp.bfloat16)

    has_sc_conv = (stride != 1) or (Cin != planes)
    if has_sc_conv:
        # shortcut 1x1 conv fused into the conv2 kernels (same M tiling)
        xs = x[:, ::stride, ::stride, :].reshape(M, Cin)
        ksc_pad = _round_up(Cin, LANE)
        xsp = _pad2(xs, m_pad, ksc_pad).astype(jnp.bfloat16)
        wsc = _pad2(fold_conv_weight(params["wsc"]), ksc_pad, c_pad).astype(jnp.bfloat16)
        y2, ysc, st = dual_matmul_stats(p2p, xsp, w2, wsc, tile)
        s2, b2 = _fold_bn_from_stats(st, 0, 1, M, params["g2"], params["b2"], c_pad)
        ssc, bsc = _fold_bn_from_stats(st, 2, 3, M, params["gsc"], params["bsc"], c_pad)
    else:
        y2, st = matmul_stats(p2p, w2, tile)
        s2, b2 = _fold_bn_from_stats(st, 0, 1, M, params["g2"], params["b2"], c_pad)
        ysc = _pad2(x.reshape(M, Cin), m_pad, c_pad)    # identity shortcut (f32)
        ssc = jnp.ones((1, c_pad), jnp.float32)
        bsc = jnp.zeros((1, c_pad), jnp.float32)

    out = bn_res_act(y2, ysc, s2, b2, ssc, bsc, tile,
                     decay=decay, beta_value=beta_value)
    out = out[:M, :planes].reshape(N, Ho, Wo, planes)
    return jnp.transpose(out, (0, 3, 1, 2))


# ----------------------------------------------------------------------------
# Pure-JAX reference (for correctness check)
# ----------------------------------------------------------------------------
def _ref_conv(x, w, stride, pad):
    return jax.lax.conv_general_dilated(
        x, w, (stride, stride), [(pad, pad), (pad, pad)],
        dimension_numbers=("NCHW", "OIHW", "NCHW"))


def _ref_bn(y, g, b):
    mean = y.mean(axis=(0, 2, 3), keepdims=True)
    var = jnp.square(y - mean).mean(axis=(0, 2, 3), keepdims=True)
    return ((y - mean) * jax.lax.rsqrt(var + EPS)
            * g.reshape(1, -1, 1, 1) + b.reshape(1, -1, 1, 1))


def _ref_nonlin(y, beta_value):
    if beta_value > 0.0:
        z = beta_value * y
        return jnp.where(z > 20.0, y, jnp.log1p(jnp.exp(z)) / beta_value)
    return jnp.maximum(y, 0.0)


def basic_block_reference(x, params, *, stride, beta_value, decay):
    out = _ref_nonlin(_ref_bn(_ref_conv(x, params["w1"], stride, 1),
                              params["g1"][0], params["b1"][0]), beta_value)
    out = _ref_bn(_ref_conv(out, params["w2"], 1, 1),
                  params["g2"][0], params["b2"][0])
    Cin, planes = params["w1"].shape[1], params["w1"].shape[0]
    if stride != 1 or Cin != planes:
        sc = _ref_bn(_ref_conv(x, params["wsc"], stride, 0),
                     params["gsc"][0], params["bsc"][0])
    else:
        sc = x
    return _ref_nonlin(out * decay + sc, beta_value)


# ----------------------------------------------------------------------------
if __name__ == "__main__":
    def make_params(key, in_planes, planes, with_shortcut):
        ks = jax.random.split(key, 9)
        p = {
            "w1": 0.3 * jax.random.normal(ks[0], (planes, in_planes, 3, 3), jnp.float32),
            "w2": 0.3 * jax.random.normal(ks[1], (planes, planes, 3, 3), jnp.float32),
            "g1": 1.0 + 0.1 * jax.random.normal(ks[2], (1, planes), jnp.float32),
            "b1": 0.1 * jax.random.normal(ks[3], (1, planes), jnp.float32),
            "g2": 1.0 + 0.1 * jax.random.normal(ks[4], (1, planes), jnp.float32),
            "b2": 0.1 * jax.random.normal(ks[5], (1, planes), jnp.float32),
        }
        if with_shortcut:
            p["wsc"] = 0.3 * jax.random.normal(ks[6], (planes, in_planes, 1, 1), jnp.float32)
            p["gsc"] = 1.0 + 0.1 * jax.random.normal(ks[7], (1, planes), jnp.float32)
            p["bsc"] = 0.1 * jax.random.normal(ks[8], (1, planes), jnp.float32)
        return p

    key = jax.random.PRNGKey(0)
    k1, k2, k3, k4 = jax.random.split(key, 4)

    # Tolerance sized for bf16 MXU operands with f32 accumulation;
    # all BN / activation / residual math is f32.
    RTOL = ATOL = 2e-2

    # Case 1: downsampling block (stride 2, channel expansion) -> conv shortcut.
    N, in_planes, planes, H, W = 2, 4, 8, 16, 16
    x = jax.random.normal(k1, (N, in_planes, H, W), jnp.float32)
    params = make_params(k2, in_planes, planes, with_shortcut=True)
    out = jax.block_until_ready(
        basic_block_forward(x, params, stride=2, beta_value=0.0, decay=0.9))
    ref = basic_block_reference(x, params, stride=2, beta_value=0.0, decay=0.9)
    assert out.shape == (N, planes, H // 2, W // 2), out.shape
    assert jnp.allclose(out, ref, rtol=RTOL, atol=ATOL), (
        float(jnp.max(jnp.abs(out - ref))))

    # Case 2: identity-shortcut block (stride 1, same planes), Softplus nonlin.
    x2 = jax.random.normal(k3, (2, 8, 16, 16), jnp.float32)
    params2 = make_params(k4, 8, 8, with_shortcut=False)
    out2 = jax.block_until_ready(
        basic_block_forward(x2, params2, stride=1, beta_value=0.5, decay=1.0))
    ref2 = basic_block_reference(x2, params2, stride=1, beta_value=0.5, decay=1.0)
    assert out2.shape == (2, 8, 16, 16), out2.shape
    assert jnp.allclose(out2, ref2, rtol=RTOL, atol=ATOL), (
        float(jnp.max(jnp.abs(out2 - ref2))))

    print("KERNEL_OK")
</pallas_src>

<mosaic_0001>
module attributes {stable_mosaic.version = 11 : i64} {
  func.func @matmul_stats_kernel(%arg0: i32, %arg1: memref<128x128xbf16, #tpu.memory_space<vmem>>, %arg2: memref<128x128xbf16, #tpu.memory_space<vmem>>, %arg3: memref<128x128xf32, #tpu.memory_space<vmem>>, %arg4: memref<8x128xf32, #tpu.memory_space<vmem>>) attributes {dimension_semantics = [#tpu.dimension_semantics<parallel>], iteration_bounds = array<i64: 1>, scalar_prefetch = 0 : i64, scratch_operands = 0 : i64, tpu.core_type = #tpu.core_type<tc>, window_params = [{transform_indices = @transform_0, window_bounds = array<i64: 128, 128>}, {pipeline_mode = #tpu.pipeline_mode<synchronous>, transform_indices = @transform_1, window_bounds = array<i64: 128, 128>}, {transform_indices = @transform_2, window_bounds = array<i64: 128, 128>}, {transform_indices = @transform_3, window_bounds = array<i64: 8, 128>}]} {
    %c0 = arith.constant 0 : index
    %c0_0 = arith.constant 0 : index
    %0 = vector.load %arg1[%c0, %c0_0] : memref<128x128xbf16, #tpu.memory_space<vmem>>, vector<128x128xbf16>
    %c0_1 = arith.constant 0 : index
    %c0_2 = arith.constant 0 : index
    %1 = vector.load %arg2[%c0_1, %c0_2] : memref<128x128xbf16, #tpu.memory_space<vmem>>, vector<128x128xbf16>
    %cst = arith.constant dense<0.000000e+00> : vector<128x128xf32>
    %2 = tpu.matmul %0, %1, %cst {dimension_numbers = #tpu.dot_dimension_numbers<[1], [0], [0], [1], [0, 0, 1, 1], [], []>} : vector<128x128xbf16>, vector<128x128xbf16>, vector<128x128xf32> -> vector<128x128xf32>
    %c0_3 = arith.constant 0 : index
    %c0_4 = arith.constant 0 : index
    %3 = vector.load %arg3[%c0_3, %c0_4] : memref<128x128xf32, #tpu.memory_space<vmem>>, vector<128x128xf32>
    tpu.vector_store %arg3[%c0_3, %c0_4], %2 {strides = array<i32>} : memref<128x128xf32, #tpu.memory_space<vmem>>, vector<128x128xf32>,
    %cst_5 = arith.constant dense<0.000000e+00> : vector<128xf32>
    %4 = vector.multi_reduction <add>, %2, %cst_5 [0] : vector<128x128xf32> to vector<128xf32>
    %5 = vector.shape_cast %4 : vector<128xf32> to vector<1x128xf32>
    %6 = arith.mulf %2, %2 : vector<128x128xf32>
    %cst_6 = arith.constant dense<0.000000e+00> : vector<128xf32>
    %7 = vector.multi_reduction <add>, %6, %cst_6 [0] : vector<128x128xf32> to vector<128xf32>
    %8 = vector.shape_cast %7 : vector<128xf32> to vector<1x128xf32>
    %9 = tpu.iota {dimensions = array<i32: 0>} : vector<8x128xi32>
    %cst_7 = arith.constant 0.000000e+00 : f32
    %10 = vector.broadcast %cst_7 : f32 to vector<8x128xf32>
    %c0_i32 = arith.constant 0 : i32
    %11 = vector.broadcast %c0_i32 : i32 to vector<8x128xi32>
    %12 = arith.cmpi eq, %9, %11 : vector<8x128xi32>
    %cst_8 = arith.constant 0.000000e+00 : f32
    %13 = vector.shape_cast %5 : vector<1x128xf32> to vector<1x128xf32>
    %14 = vector.broadcast %13 : vector<1x128xf32> to vector<8x128xf32>
    %15 = vector.broadcast %cst_8 : f32 to vector<8x128xf32>
    %16 = arith.select %12, %14, %15 : vector<8x128xi1>, vector<8x128xf32>
    %17 = arith.addf %10, %16 : vector<8x128xf32>
    %c1_i32 = arith.constant 1 : i32
    %18 = vector.broadcast %c1_i32 : i32 to vector<8x128xi32>
    %19 = arith.cmpi eq, %9, %18 : vector<8x128xi32>
    %cst_9 = arith.constant 0.000000e+00 : f32
    %20 = vector.shape_cast %8 : vector<1x128xf32> to vector<1x128xf32>
    %21 = vector.broadcast %20 : vector<1x128xf32> to vector<8x128xf32>
    %22 = vector.broadcast %cst_9 : f32 to vector<8x128xf32>
    %23 = arith.select %19, %21, %22 : vector<8x128xi1>, vector<8x128xf32>
    %24 = arith.addf %17, %23 : vector<8x128xf32>
    %c0_10 = arith.constant 0 : index
    %c0_11 = arith.constant 0 : index
    %25 = vector.load %arg4[%c0_10, %c0_11] : memref<8x128xf32, #tpu.memory_space<vmem>>, vector<8x128xf32>
    tpu.vector_store %arg4[%c0_10, %c0_11], %24 {strides = array<i32>} : memref<8x128xf32, #tpu.memory_space<vmem>>, vector<8x128xf32>,
    return
  }
  func.func @transform_0(%arg0: i32) -> (i32, i32) {
    %c0_i32 = arith.constant 0 : i32
    %c0_i32_0 = arith.constant 0 : i32
    return %arg0, %c0_i32 : i32, i32
  }
  func.func @transform_1(%arg0: i32) -> (i32, i32) {
    %c0_i32 = arith.constant 0 : i32
    %c0_i32_0 = arith.constant 0 : i32
    %c0_i32_1 = arith.constant 0 : i32
    return %c0_i32, %c0_i32_0 : i32, i32
  }
  func.func @transform_2(%arg0: i32) -> (i32, i32) {
    %c0_i32 = arith.constant 0 : i32
    %c0_i32_0 = arith.constant 0 : i32
    return %arg0, %c0_i32 : i32, i32
  }
  func.func @transform_3(%arg0: i32) -> (i32, i32) {
    %c0_i32 = arith.constant 0 : i32
    %c0_i32_0 = arith.constant 0 : i32
    return %arg0, %c0_i32 : i32, i32
  }
}

</mosaic_0001>

<llo_original>
// kernel: tpu_custom_call.1
$region0: #{tpu_custom_call.1}
  #allocation0 [shape = 'u32[]', space=smem, size = 0x4, offset = 0x4, fixed_abs, tag = 'smem constant byte address 0x4 - core index']
  #allocation1 [shape = 'u32[72,128]{1,0:T(1,128)}', space=vmem, size = 0x9000, scoped, tag = 'internal scratch']
  %s0 = inlined_call_operand.hbm [shape: bf16[128,128], index: 0, kind: input, shape index: {}]
  %s1 = inlined_call_operand.hbm [shape: bf16[128,128], index: 1, kind: input, shape index: {}]
  %s2 = inlined_call_operand.hbm [shape: f32[128,128], index: 2, kind: output, shape index: {0}]
  %s3 = inlined_call_operand.hbm [shape: f32[8,128], index: 3, kind: output, shape index: {1}]
  %4 = xla_tuple %s2, %s3
  %s5 = sld [smem:[#allocation0]]
  $region34: #{tpu_custom_call.1} parent=0
    _
  %s7 = ssub.s32 1, %s5
  %s8 = scalar_select 0, %s7, %s5
  $region1: #{tpu_custom_call.1} parent=0
    #allocation2 [shape = 'u8[32768]{0}', space=vmem, size = 0x8000, scoped, tag = 'input window, operand 0, single buffered']
    #allocation3 [shape = 's32[1]{0}', space=sflag, size = 0x4, scoped, tag = 'scoped memory for tpu_custom_call.1']
    #allocation4 [shape = 's32[1]{0}', space=sflag, size = 0x4, scoped, tag = 'scoped memory for tpu_custom_call.1']
    #allocation5 [shape = 'u8[32768]{0}', space=vmem, size = 0x8000, scoped, tag = 'input window, operand 1, single buffered']
    #allocation6 [shape = 's32[1]{0}', space=sflag, size = 0x4, scoped, tag = 'scoped memory for tpu_custom_call.1']
    #allocation7 [shape = 'u8[65536]{0}', space=vmem, size = 0x10000, scoped, tag = 'output window, operand 0, single buffered']
    #allocation8 [shape = 'u8[4096]{0}', space=vmem, size = 0x1000, scoped, tag = 'output window, operand 1, single buffered']
    #allocation9 [shape = 's32[1]{0}', space=sflag, size = 0x4, scoped, tag = 'scoped memory for tpu_custom_call.1']
    %9 = vsyncpa [#allocation3], 0
    %10 = vsyncpa [#allocation6], 0
    %11 = vsyncpa [#allocation4], 0
    %12 = vsyncpa [#allocation9], 0
    // Predicated region
    $region2: #{tpu_custom_call.1} parent=1 // pred_check
      _
    $region3: #{tpu_custom_call.1} parent=1 // pred_check_branch
      %14 = sbr.rel (0) target = $region5
    $region4: #{tpu_custom_call.1} parent=1 // pred_region
      %16 = vsyncadd [#allocation3], 0
      %s17 = sshll.u32 %s0, 4
      %s18 = int_to_ptr.hbm [resolvable:$true] %s17
      %s19 = sshll.u32 [#allocation2], 4
      %s20 = int_to_ptr.vmem [resolvable:$true] %s19
      %25 = dma.hbm_to_vmem [thread:$0]  %s18, 1024, %s20, [#allocation3], 64, 64, 4
    $region5: #{tpu_custom_call.1} parent=1 // pred_fallthru
      _
    // Predicated region
    $region6: #{tpu_custom_call.1} parent=1 // pred_check
      _
    $region7: #{tpu_custom_call.1} parent=1 // pred_check_branch
      %27 = sbr.rel (0) target = $region9
    $region8: #{tpu_custom_call.1} parent=1 // pred_region
      %29 = vsyncadd [#allocation6], 0
      %s30 = sshll.u32 %s1, 4
      %s31 = int_to_ptr.hbm [resolvable:$true] %s30
      %s32 = sshll.u32 [#allocation5], 4
      %s33 = int_to_ptr.vmem [resolvable:$true] %s32
      %38 = dma.hbm_to_vmem [thread:$0]  %s31, 1024, %s33, [#allocation6], 64, 64, 4
    $region9: #{tpu_custom_call.1} parent=1 // pred_fallthru
      _
    // Predicated region
    $region10: #{tpu_custom_call.1} parent=1 // pred_check
      _
    $region11: #{tpu_custom_call.1} parent=1 // pred_check_branch
      %40 = sbr.rel (0) target = $region13
    $region12: #{tpu_custom_call.1} parent=1 // pred_region
      %42 = dma.done [#allocation3], 1024
    $region13: #{tpu_custom_call.1} parent=1 // pred_fallthru
      _
    // Predicated region
    $region14: #{tpu_custom_call.1} parent=1 // pred_check
      _
    $region15: #{tpu_custom_call.1} parent=1 // pred_check_branch
      %44 = sbr.rel (0) target = $region17
    $region16: #{tpu_custom_call.1} parent=1 // pred_region
      %46 = dma.done [#allocation6], 1024
    $region17: #{tpu_custom_call.1} parent=1 // pred_fallthru
      _
    %v47 = vld [vmem:[#allocation2] sm:$0xf]
    %v48 = vld [vmem:[#allocation2 + $0x4] sm:$0xf]
    %v49 = vld [vmem:[#allocation2 + $0x8] sm:$0xf]
    %v50 = vld [vmem:[#allocation2 + $0xc] sm:$0xf]
    %v51 = vld [vmem:[#allocation2 + $0x10] sm:$0xf]
    %v52 = vld [vmem:[#allocation2 + $0x14] sm:$0xf]
    %v53 = vld [vmem:[#allocation2 + $0x18] sm:$0xf]
    %v54 = vld [vmem:[#allocation2 + $0x1c] sm:$0xf]
    %v55 = vld [vmem:[#allocation2 + $0x20] sm:$0xf]
    %v56 = vld [vmem:[#allocation2 + $0x24] sm:$0xf]
    %v57 = vld [vmem:[#allocation2 + $0x28] sm:$0xf]
    %v58 = vld [vmem:[#allocation2 + $0x2c] sm:$0xf]
    %v59 = vld [vmem:[#allocation2 + $0x30] sm:$0xf]
    %v60 = vld [vmem:[#allocation2 + $0x34] sm:$0xf]
    %v61 = vld [vmem:[#allocation2 + $0x38] sm:$0xf]
    %v62 = vld [vmem:[#allocation2 + $0x3c] sm:$0xf]
    %v63 = vld [vmem:[#allocation5] sm:$0xf]
    %v64 = vld [vmem:[#allocation5 + $0x4] sm:$0xf]
    %v65 = vld [vmem:[#allocation5 + $0x8] sm:$0xf]
    %v66 = vld [vmem:[#allocation5 + $0xc] sm:$0xf]
    %v67 = vld [vmem:[#allocation5 + $0x10] sm:$0xf]
    %v68 = vld [vmem:[#allocation5 + $0x14] sm:$0xf]
    %v69 = vld [vmem:[#allocation5 + $0x18] sm:$0xf]
    %v70 = vld [vmem:[#allocation5 + $0x1c] sm:$0xf]
    %v71 = vld [vmem:[#allocation5 + $0x20] sm:$0xf]
    %v72 = vld [vmem:[#allocation5 + $0x24] sm:$0xf]
    %v73 = vld [vmem:[#allocation5 + $0x28] sm:$0xf]
    %v74 = vld [vmem:[#allocation5 + $0x2c] sm:$0xf]
    %v75 = vld [vmem:[#allocation5 + $0x30] sm:$0xf]
    %v76 = vld [vmem:[#allocation5 + $0x34] sm:$0xf]
    %v77 = vld [vmem:[#allocation5 + $0x38] sm:$0xf]
    %v78 = vld [vmem:[#allocation5 + $0x3c] sm:$0xf]
    %v95 = vunpack.c.l.b16 %v47
    %v96 = vunpack.c.l.b16 %v48
    %v97 = vunpack.c.l.b16 %v49
    %v98 = vunpack.c.l.b16 %v50
    %v99 = vunpack.c.l.b16 %v51
    %v100 = vunpack.c.l.b16 %v52
    %v101 = vunpack.c.l.b16 %v53
    %v102 = vunpack.c.l.b16 %v54
    %v103 = vunpack.c.l.b16 %v55
    %v104 = vunpack.c.l.b16 %v56
    %v105 = vunpack.c.l.b16 %v57
    %v106 = vunpack.c.l.b16 %v58
    %v107 = vunpack.c.l.b16 %v59
    %v108 = vunpack.c.l.b16 %v60
    %v109 = vunpack.c.l.b16 %v61
    %v110 = vunpack.c.l.b16 %v62
    %v111 = vpack.c.b16 %v96, %v95
    %v112 = vpack.c.b16 %v98, %v97
    %v113 = vpack.c.b16 %v100, %v99
    %v114 = vpack.c.b16 %v102, %v101
    %v115 = vpack.c.b16 %v104, %v103
    %v116 = vpack.c.b16 %v106, %v105
    %v117 = vpack.c.b16 %v108, %v107
    %v118 = vpack.c.b16 %v110, %v109
    %v143 = vunpack.c.l.b16 %v63
    %v144 = vunpack.c.l.b16 %v64
    %v145 = vunpack.c.l.b16 %v65
    %v146 = vunpack.c.l.b16 %v66
    %v147 = vunpack.c.l.b16 %v67
    %v148 = vunpack.c.l.b16 %v68
    %v149 = vunpack.c.l.b16 %v69
    %v150 = vunpack.c.l.b16 %v70
    %v151 = vunpack.c.l.b16 %v71
    %v152 = vunpack.c.l.b16 %v72
    %v153 = vunpack.c.l.b16 %v73
    %v154 = vunpack.c.l.b16 %v74
    %v155 = vunpack.c.l.b16 %v75
    %v156 = vunpack.c.l.b16 %v76
    %v157 = vunpack.c.l.b16 %v77
    %v158 = vunpack.c.l.b16 %v78
    %v159 = vpack.c.b16 %v144, %v143
    %v160 = vpack.c.b16 %v146, %v145
    %v161 = vpack.c.b16 %v148, %v147
    %v162 = vpack.c.b16 %v150, %v149
    %v163 = vpack.c.b16 %v152, %v151
    %v164 = vpack.c.b16 %v154, %v153
    %v165 = vpack.c.b16 %v156, %v155
    %v166 = vpack.c.b16 %v158, %v157
    %175 = vmatpush.bf16.msra.mxu0 %v166
    %176 = vmatpush.bf16.msra.mxu0 %v165
    %177 = vmatpush.bf16.msra.mxu0 %v164
    %178 = vmatpush.bf16.msra.mxu0 %v163
    %179 = vmatpush.bf16.msra.mxu0 %v162
    %180 = vmatpush.bf16.msra.mxu0 %v161
    %181 = vmatpush.bf16.msra.mxu0 %v160
    %182 = vmatpush.bf16.msra.mxu0 %v159
    %183 = vmatmul.bf16.gmra.mxu0 %v111
    %v184 = vpop.f32.mrf.mxu0
    %v185 = vadd.f32 0.0, %v184
    %v186 = vpop.f32.mrf.mxu0
    %v187 = vadd.f32 0.0, %v186
    %188 = vmatmul.bf16.gmra.mxu0 %v112
    %v189 = vpop.f32.mrf.mxu0
    %v190 = vadd.f32 0.0, %v189
    %v191 = vpop.f32.mrf.mxu0
    %v192 = vadd.f32 0.0, %v191
    %193 = vmatmul.bf16.gmra.mxu0 %v113
    %v194 = vpop.f32.mrf.mxu0
    %v195 = vadd.f32 0.0, %v194
    %v196 = vpop.f32.mrf.mxu0
    %v197 = vadd.f32 0.0, %v196
    %198 = vmatmul.bf16.gmra.mxu0 %v114
    %v199 = vpop.f32.mrf.mxu0
    %v200 = vadd.f32 0.0, %v199
    %v201 = vpop.f32.mrf.mxu0
    %v202 = vadd.f32 0.0, %v201
    %203 = vmatmul.bf16.gmra.mxu0 %v115
    %v204 = vpop.f32.mrf.mxu0
    %v205 = vadd.f32 0.0, %v204
    %v206 = vpop.f32.mrf.mxu0
    %v207 = vadd.f32 0.0, %v206
    %208 = vmatmul.bf16.gmra.mxu0 %v116
    %v209 = vpop.f32.mrf.mxu0
    %v210 = vadd.f32 0.0, %v209
    %v211 = vpop.f32.mrf.mxu0
    %v212 = vadd.f32 0.0, %v211
    %213 = vmatmul.bf16.gmra.mxu0 %v117
    %v214 = vpop.f32.mrf.mxu0
    %v215 = vadd.f32 0.0, %v214
    %v216 = vpop.f32.mrf.mxu0
    %v217 = vadd.f32 0.0, %v216
    %218 = vmatmul.bf16.gmra.mxu0 %v118
    %v219 = vpop.f32.mrf.mxu0
    %v220 = vadd.f32 0.0, %v219
    %v221 = vpop.f32.mrf.mxu0
    %v222 = vadd.f32 0.0, %v221
    %223 = vdwg.mxu0
    %224 = vst [vmem:[#allocation7] sm:$0xff] %v185
    %225 = vst [vmem:[#allocation7 + $0x8] sm:$0xff] %v187
    %226 = vst [vmem:[#allocation7 + $0x10] sm:$0xff] %v190
    %227 = vst [vmem:[#allocation7 + $0x18] sm:$0xff] %v192
    %228 = vst [vmem:[#allocation7 + $0x20] sm:$0xff] %v195
    %229 = vst [vmem:[#allocation7 + $0x28] sm:$0xff] %v197
    %230 = vst [vmem:[#allocation7 + $0x30] sm:$0xff] %v200
    %231 = vst [vmem:[#allocation7 + $0x38] sm:$0xff] %v202
    %232 = vst [vmem:[#allocation7 + $0x40] sm:$0xff] %v205
    %233 = vst [vmem:[#allocation7 + $0x48] sm:$0xff] %v207
    %234 = vst [vmem:[#allocation7 + $0x50] sm:$0xff] %v210
    %235 = vst [vmem:[#allocation7 + $0x58] sm:$0xff] %v212
    %236 = vst [vmem:[#allocation7 + $0x60] sm:$0xff] %v215
    %237 = vst [vmem:[#allocation7 + $0x68] sm:$0xff] %v217
    %238 = vst [vmem:[#allocation7 + $0x70] sm:$0xff] %v220
    %239 = vst [vmem:[#allocation7 + $0x78] sm:$0xff] %v222
    %v240 = vadd.f32 %v185, %v187
    %v241 = vadd.f32 %v240, %v190
    %v242 = vadd.f32 %v241, %v192
    %v243 = vadd.f32 %v242, %v195
    %v244 = vadd.f32 %v243, %v197
    %v245 = vadd.f32 %v244, %v200
    %v246 = vadd.f32 %v245, %v202
    %v247 = vadd.f32 %v246, %v205
    %v248 = vadd.f32 %v247, %v207
    %v249 = vadd.f32 %v248, %v210
    %v250 = vadd.f32 %v249, %v212
    %v251 = vadd.f32 %v250, %v215
    %v252 = vadd.f32 %v251, %v217
    %v253 = vadd.f32 %v252, %v220
    %v254 = vadd.f32 %v253, %v222
    %v255 = vrot.slane %v254, 4
    %v256 = vadd.f32 %v254, %v255
    %v257 = vrot.slane %v256, 2
    %v258 = vadd.f32 %v256, %v257
    %v259 = vrot.slane %v258, 1
    %v260 = vadd.f32 %v258, %v259
    %v261 = vmul.f32 %v185, %v185
    %v262 = vmul.f32 %v187, %v187
    %v263 = vmul.f32 %v190, %v190
    %v264 = vmul.f32 %v192, %v192
    %v265 = vmul.f32 %v195, %v195
    %v266 = vmul.f32 %v197, %v197
    %v267 = vmul.f32 %v200, %v200
    %v268 = vmul.f32 %v202, %v202
    %v269 = vmul.f32 %v205, %v205
    %v270 = vmul.f32 %v207, %v207
    %v271 = vmul.f32 %v210, %v210
    %v272 = vmul.f32 %v212, %v212
    %v273 = vmul.f32 %v215, %v215
    %v274 = vmul.f32 %v217, %v217
    %v275 = vmul.f32 %v220, %v220
    %v276 = vmul.f32 %v222, %v222
    %v277 = vadd.f32 %v261, %v262
    %v278 = vadd.f32 %v277, %v263
    %v279 = vadd.f32 %v278, %v264
    %v280 = vadd.f32 %v279, %v265
    %v281 = vadd.f32 %v280, %v266
    %v282 = vadd.f32 %v281, %v267
    %v283 = vadd.f32 %v282, %v268
    %v284 = vadd.f32 %v283, %v269
    %v285 = vadd.f32 %v284, %v270
    %v286 = vadd.f32 %v285, %v271
    %v287 = vadd.f32 %v286, %v272
    %v288 = vadd.f32 %v287, %v273
    %v289 = vadd.f32 %v288, %v274
    %v290 = vadd.f32 %v289, %v275
    %v291 = vadd.f32 %v290, %v276
    %v292 = vrot.slane %v291, 4
    %v293 = vadd.f32 %v291, %v292
    %v294 = vrot.slane %v293, 2
    %v295 = vadd.f32 %v293, %v294
    %v296 = vrot.slane %v295, 1
    %v297 = vadd.f32 %v295, %v296
    %v298 = vlaneseq
    %v299 = vshrl.u32 %v298, 7
    %vm300 = vcmp.eq.s32.totalorder %v299, 0
    %v301 = vsel %vm300, %v260, 0.0
    %v302 = vadd.f32 %v301, 0.0
    %vm303 = vcmp.eq.s32.totalorder %v299, 1
    %v304 = vsel %vm303, %v297, 0.0
    %v305 = vadd.f32 %v302, %v304
    %306 = vst [vmem:[#allocation8] sm:$0xff] %v305
    // Predicated region
    $region18: #{tpu_custom_call.1} parent=1 // pred_check
      _
    $region19: #{tpu_custom_call.1} parent=1 // pred_check_branch
      %308 = sbr.rel (0) target = $region21
    $region20: #{tpu_custom_call.1} parent=1 // pred_region
      %310 = vsyncadd [#allocation4], 0
      %s311 = sshll.u32 [#allocation7], 4
      %s312 = int_to_ptr.vmem [resolvable:$true] %s311
      %s313 = sshll.u32 %s2, 4
      %s314 = int_to_ptr.hbm [resolvable:$true] %s313
      %319 = dma.vmem_to_hbm [thread:$0]  %s312, 2048, %s314, [#allocation4], 128, 128, 8
    $region21: #{tpu_custom_call.1} parent=1 // pred_fallthru
      _
    // Predicated region
    $region22: #{tpu_custom_call.1} parent=1 // pred_check
      _
    $region23: #{tpu_custom_call.1} parent=1 // pred_check_branch
      %321 = sbr.rel (0) target = $region25
    $region24: #{tpu_custom_call.1} parent=1 // pred_region
      %323 = vsyncadd [#allocation9], 0
      %s325 = sshll.u32 [#allocation8], 4
      %s326 = int_to_ptr.vmem [resolvable:$true] %s325
      %s327 = sshll.u32 %s3, 4
      %s328 = int_to_ptr.hbm [resolvable:$true] %s327
      %330 = dma.vmem_to_hbm [thread:$0]  %s326, 128, %s328, [#allocation9]
    $region25: #{tpu_custom_call.1} parent=1 // pred_fallthru
      _
    // Predicated region
    $region26: #{tpu_custom_call.1} parent=1 // pred_check
      _
    $region27: #{tpu_custom_call.1} parent=1 // pred_check_branch
      %332 = sbr.rel (0) target = $region29
    $region28: #{tpu_custom_call.1} parent=1 // pred_region
      %334 = dma.done [#allocation4], 2048
    $region29: #{tpu_custom_call.1} parent=1 // pred_fallthru
      _
    // Predicated region
    $region30: #{tpu_custom_call.1} parent=1 // pred_check
      _
    $region31: #{tpu_custom_call.1} parent=1 // pred_check_branch
      %336 = sbr.rel (0) target = $region33
    $region32: #{tpu_custom_call.1} parent=1 // pred_region
      %338 = dma.done [#allocation9], 128
    $region33: #{tpu_custom_call.1} parent=1 // pred_fallthru
      _
    %339 = vsyncpa [#allocation3], 1
    %340 = vsyncpa [#allocation6], 1
    %341 = vsyncpa [#allocation4], 1
    %342 = vsyncpa [#allocation9], 1

</llo_original>
